<compile_context>
chip_gen: v6e
topology: v6e:2x2x1
jax: 0.10.0
libtpu: 0.0.40
codegen_flags: <defaults>
</compile_context>

<pallas_src>
import functools

import jax
import jax.numpy as jnp
from jax.experimental import pallas as pl
from jax.experimental.pallas import tpu as pltpu


LEAKY_SLOPE = 0.2
_N_CORES = 2  # K-stream split factor for the optional dual-TensorCore (v7x) path


def _round_up(x, m):
    return (x + m - 1) // m * m


def _pick_tk(d, hidden, two_b, requested_tk, vmem_budget_bytes=30 << 20):
    """Largest K tile (multiple of 128) whose double-buffered working set fits the budget.

    bytes(tk) ~= 2*(tk*hidden*2) [w1, bf16] + 2*(two_b*tk*2) [x, bf16]
               + two_b*hidden*4 [acc] + small resident params.
    """
    per_tk = 2 * (hidden + two_b) * 2
    fixed = two_b * hidden * 4 + 4 * hidden * 4 + (1 << 16)
    tk_max = max((vmem_budget_bytes - fixed) // per_tk, 128)
    tk = min(int(requested_tk), int(tk_max), _round_up(d, 128))
    return max(tk // 128 * 128, 128)


def _relativistic_bce_epilogue(h, w2, b2, out_ref, n_fake, n_real):
    """From post-activation hidden block h (2B, HIDDEN) to the packed scalar outputs."""
    # Linear-2 -> one logit per sample: VPU multiply + lane reduction
    # (a 128x1 MXU dot would waste the array; XLU reduce is free filler).
    logits = jnp.sum(h * w2, axis=-1, keepdims=True) + b2        # (2B, 1)

    row = jax.lax.broadcasted_iota(jnp.int32, logits.shape, 0)
    is_fake = row < n_fake

    mean_fake = jnp.sum(jnp.where(is_fake, logits, 0.0)) / n_fake
    mean_real = jnp.sum(jnp.where(is_fake, 0.0, logits)) / n_real

    # relativistic logits
    x_real = logits - mean_fake   # valid on the real rows (target = 1)
    x_fake = logits - mean_real   # valid on the fake rows (target = 0)

    def bce_elem(x, target):
        # numerically-stable BCEWithLogits (matches torch)
        return (jnp.maximum(x, 0.0) - x * target
                + jnp.log1p(jnp.exp(-jnp.abs(x))))

    l_d_real = jnp.sum(jnp.where(is_fake, 0.0, bce_elem(x_real, 1.0))) / n_real
    l_d_fake = jnp.sum(jnp.where(is_fake, bce_elem(x_fake, 0.0), 0.0)) / n_fake
    l_d_total = 0.5 * (l_d_fake + l_d_real)

    lane = jax.lax.broadcasted_iota(jnp.int32, out_ref.shape, 1)
    out_ref[...] = (jnp.where(lane == 0, l_d_total, 0.0)
                    + jnp.where(lane == 1, l_d_real, 0.0)
                    + jnp.where(lane == 2, l_d_fake, 0.0)
                    + jnp.where(lane == 3, mean_real, 0.0)
                    + jnp.where(lane == 4, mean_fake, 0.0))


def _adversarial_dis_kernel(x_ref, w1_ref, b1_ref, w2_ref, b2_ref,
                            out_ref, acc_ref, *, n_fake, n_real):
    """Single-core fused path. Grid over the K (feature) dimension.

    x_ref  : (2B, TK)     bf16   rows [0:n_fake] = fake, rows [n_fake:] = real
    w1_ref : (TK, HIDDEN) bf16
    b1_ref : (1, HIDDEN)  f32
    w2_ref : (1, HIDDEN)  f32
    b2_ref : (1, 1)       f32
    out_ref: (1, 128)     f32    lanes 0..4 = [l_d_total, l_d_real, l_d_fake, D_real, D_fake]
    acc_ref: (2B, HIDDEN) f32 VMEM scratch (Linear-1 accumulator, seeded with b1)
    """
    k = pl.program_id(0)

    @pl.when(k == 0)
    def _init():
        # seed the accumulator with the Linear-1 bias -> no bias add in the epilogue
        acc_ref[...] = jnp.broadcast_to(b1_ref[...], acc_ref.shape)

    # Linear-1 partial matmul for this K tile (bf16 MXU, f32 accumulate).
    acc_ref[...] += jnp.dot(x_ref[...], w1_ref[...],
                            preferred_element_type=jnp.float32)

    @pl.when(k == pl.num_programs(0) - 1)
    def _finalize():
        h = acc_ref[...]
        h = jnp.where(h > 0.0, h, LEAKY_SLOPE * h)          # LeakyReLU(0.2)
        _relativistic_bce_epilogue(h, w2_ref[...], b2_ref[...], out_ref, n_fake, n_real)


def _linear1_partial_kernel(x_ref, w1_ref, part_ref, acc_ref):
    """Dual-TensorCore path: per-core partial Linear-1 sums.

    Grid = (cores, k_per_core); leading axis is "parallel" so each TensorCore streams
    half of the w1 K-tiles and writes its own (2B, HIDDEN) partial.
    """
    k = pl.program_id(1)

    @pl.when(k == 0)
    def _init():
        acc_ref[...] = jnp.zeros_like(acc_ref)

    acc_ref[...] += jnp.dot(x_ref[...], w1_ref[...],
                            preferred_element_type=jnp.float32)

    @pl.when(k == pl.num_programs(1) - 1)
    def _write():
        part_ref[...] = acc_ref[...]


def _epilogue_kernel(part_ref, b1_ref, w2_ref, b2_ref, out_ref, *, n_fake, n_real):
    """Combine per-core partials and run the (tiny) bias/LeakyReLU/Linear-2/BCE epilogue."""
    h = jnp.sum(part_ref[...], axis=0) + b1_ref[...]
    h = jnp.where(h > 0.0, h, LEAKY_SLOPE * h)
    _relativistic_bce_epilogue(h, w2_ref[...], b2_ref[...], out_ref, n_fake, n_real)


def adversarial_discriminator_loss(fake, real, w1, b1, w2, b2, *,
                                   tk=8192, split_k_across_cores=False):
    """Flattens NCHW inputs, fuses fake/real, and invokes the K-tiled Pallas kernel(s).

    Returns (l_d_total, gan_logs) mirroring Adversarial.forward(stage='discriminator').
    `split_k_across_cores=True` enables the v7x dual-TensorCore K-stream split (only
    worthwhile for large D; keeps total HBM bytes constant, ~doubles DMA parallelism).
    """
    B = fake.shape[0]
    D, hidden = w1.shape
    two_b = 2 * B

    fake_flat = fake.reshape(B, -1)
    real_flat = real.reshape(B, -1)
    assert fake_flat.shape[1] == D and real_flat.shape == fake_flat.shape

    tk = _pick_tk(D, hidden, two_b, tk)
    granule = tk * (_N_CORES if split_k_across_cores else 1)
    d_pad = _round_up(D, granule)
    n_k = d_pad // tk

    # --- wrapper-side prep: single bf16 materialization, no f32 round trips ---
    x = jnp.concatenate([fake_flat.astype(jnp.bfloat16),
                         real_flat.astype(jnp.bfloat16)], axis=0)     # (2B, D) fake;real
    w1_bf16 = w1.astype(jnp.bfloat16)
    if d_pad > D:
        # zero-padding the feature dim is loss-preserving
        x = jnp.pad(x, ((0, 0), (0, d_pad - D)))
        w1_bf16 = jnp.pad(w1_bf16, ((0, d_pad - D), (0, 0)))

    b1_2d = b1.reshape(1, hidden).astype(jnp.float32)
    w2_2d = w2.reshape(1, hidden).astype(jnp.float32)
    b2_2d = b2.reshape(1, 1).astype(jnp.float32)

    # Scoped-VMEM sizing: v5e default scoped limit is 16 MiB, v6e/v7x 32 MiB default,
    # v7x only 64 MiB physical per core -> clamp to 48 MiB so big tiles never oversubscribe.
    vmem_needed = (2 * tk * hidden * 2          # w1 double buffer (bf16)
                   + 2 * two_b * tk * 2         # x double buffer (bf16)
                   + two_b * hidden * 4         # f32 accumulator scratch
                   + 4 * hidden * 4             # resident b1 / w2
                   + (1 << 17))                 # headroom for out / b2 / internals
    vmem_limit = int(min(max(int(vmem_needed * 1.5), 16 << 20), 48 << 20))

    cost = pl.CostEstimate(
        flops=2 * two_b * d_pad * hidden + 4 * two_b * hidden,
        transcendentals=2 * two_b,
        bytes_accessed=d_pad * hidden * 2 + two_b * d_pad * 2 + 2 * hidden * 4 + 128 * 4,
    )

    if not split_k_across_cores:
        kernel = functools.partial(_adversarial_dis_kernel, n_fake=B, n_real=B)
        out = pl.pallas_call(
            kernel,
            out_shape=jax.ShapeDtypeStruct((1, 128), jnp.float32),
            grid_spec=pltpu.PrefetchScalarGridSpec(
                num_scalar_prefetch=0,
                grid=(n_k,),
                in_specs=[
                    pl.BlockSpec((two_b, tk), lambda k: (0, k)),       # activations (fake;real)
                    pl.BlockSpec((tk, hidden), lambda k: (k, 0)),      # w1 K-tile stream
                    pl.BlockSpec((1, hidden), lambda k: (0, 0)),       # b1 (resident)
                    pl.BlockSpec((1, hidden), lambda k: (0, 0)),       # w2 (resident)
                    pl.BlockSpec((1, 1), lambda k: (0, 0)),            # b2 (resident)
                ],
                out_specs=pl.BlockSpec((1, 128), lambda k: (0, 0)),    # packed scalars
                scratch_shapes=[pltpu.VMEM((two_b, hidden), jnp.float32)],
            ),
            compiler_params=pltpu.CompilerParams(
                dimension_semantics=("arbitrary",),                    # K is a reduction axis
                vmem_limit_bytes=vmem_limit),
            cost_estimate=cost,
        )(x, w1_bf16, b1_2d, w2_2d, b2_2d)
    else:
        nk_per_core = n_k // _N_CORES
        partials = pl.pallas_call(
            _linear1_partial_kernel,
            out_shape=jax.ShapeDtypeStruct((_N_CORES, two_b, hidden), jnp.float32),
            grid_spec=pltpu.PrefetchScalarGridSpec(
                num_scalar_prefetch=0,
                grid=(_N_CORES, nk_per_core),
                in_specs=[
                    pl.BlockSpec((two_b, tk),
                                 lambda c, k: (0, c * nk_per_core + k)),
                    pl.BlockSpec((tk, hidden),
                                 lambda c, k: (c * nk_per_core + k, 0)),
                ],
                out_specs=pl.BlockSpec((None, two_b, hidden),
                                       lambda c, k: (c, 0, 0)),
                scratch_shapes=[pltpu.VMEM((two_b, hidden), jnp.float32)],
            ),
            compiler_params=pltpu.CompilerParams(
                dimension_semantics=("parallel", "arbitrary"),
                vmem_limit_bytes=vmem_limit),
            cost_estimate=cost,
        )(x, w1_bf16)

        # tiny combine + epilogue kernel (single invocation, everything VMEM-resident)
        out = pl.pallas_call(
            functools.partial(_epilogue_kernel, n_fake=B, n_real=B),
            out_shape=jax.ShapeDtypeStruct((1, 128), jnp.float32),
        )(partials, b1_2d, w2_2d, b2_2d)

    l_d_total = out[0, 0]
    gan_logs = {
        'l_d_real': out[0, 1],
        'l_d_fake': out[0, 2],
        'D_real': out[0, 3],
        'D_fake': out[0, 4],
    }
    return l_d_total, gan_logs


def _reference(fake, real, w1, b1, w2, b2):
    """Pure-JAX f32 reference of the same forward pass (for validation)."""
    B = fake.shape[0]

    def netD(x):
        h = x.reshape(B, -1).astype(jnp.float32) @ w1 + b1
        h = jnp.where(h > 0, h, LEAKY_SLOPE * h)
        return h @ w2.reshape(-1, 1) + b2

    pf, pr = netD(fake), netD(real)

    def bce(x, t):
        return jnp.mean(jnp.maximum(x, 0.0) - x * t + jnp.log1p(jnp.exp(-jnp.abs(x))))

    l_real = bce(pr - jnp.mean(pf), 1.0)
    l_fake = bce(pf - jnp.mean(pr), 0.0)
    return 0.5 * (l_real + l_fake)


if __name__ == "__main__":
    key = jax.random.PRNGKey(0)
    k_fake, k_real, k_w1, k_b1, k_w2, k_b2 = jax.random.split(key, 6)

    B, C, H, W = 2, 4, 16, 16
    D = C * H * W            # 1024 -> single grid step at the default (large) tk
    HIDDEN = 128

    fake = jax.random.normal(k_fake, (B, C, H, W), dtype=jnp.float32)
    real = jax.random.normal(k_real, (B, C, H, W), dtype=jnp.float32)

    # deterministic synthetic discriminator parameters
    w1 = jax.random.normal(k_w1, (D, HIDDEN), dtype=jnp.float32) * 0.02
    b1 = jax.random.normal(k_b1, (HIDDEN,), dtype=jnp.float32) * 0.01
    w2 = jax.random.normal(k_w2, (HIDDEN,), dtype=jnp.float32) * 0.05
    b2 = jax.random.normal(k_b2, (1,), dtype=jnp.float32) * 0.01

    ref = _reference(fake, real, w1, b1, w2, b2)

    # Path 1: fused single-kernel path (default tk -> single grid step for D=1024).
    l_d_total, gan_logs = adversarial_discriminator_loss(fake, real, w1, b1, w2, b2)
    jax.block_until_ready(l_d_total)
    # bf16 weight/activation streaming in the kernel -> tolerance loosened vs f32 reference
    assert jnp.allclose(l_d_total, ref, atol=2e-2, rtol=2e-2), (l_d_total, ref)
    assert all(bool(jnp.isfinite(v)) for v in gan_logs.values())

    # Path 2: dual-TensorCore K-stream split (v7x); small tk forced to exercise the grid.
    l_split, logs_split = adversarial_discriminator_loss(
        fake, real, w1, b1, w2, b2, tk=256, split_k_across_cores=True)
    jax.block_until_ready(l_split)
    assert jnp.allclose(l_split, ref, atol=2e-2, rtol=2e-2), (l_split, ref)
    assert jnp.allclose(l_split, l_d_total, atol=2e-2, rtol=2e-2)
    assert all(bool(jnp.isfinite(v)) for v in logs_split.values())

    # TODO(synk): diffaug / fsfilter / conditional-concat / wgan-gp branches and arbitrary
    # external netD architectures are outside this kernel; only the default relativistic
    # vanilla discriminator path with the synthetic MLP netD is implemented.

    print("KERNEL_OK")
</pallas_src>

<mosaic_0001>
module attributes {stable_mosaic.version = 11 : i64} {
  func.func @_adversarial_dis_kernel(%arg0: i32, %arg1: memref<4x1024xbf16, #tpu.memory_space<vmem>>, %arg2: memref<1024x128xbf16, #tpu.memory_space<vmem>>, %arg3: memref<1x128xf32, #tpu.memory_space<vmem>>, %arg4: memref<1x128xf32, #tpu.memory_space<vmem>>, %arg5: memref<1x1xf32, #tpu.memory_space<vmem>>, %arg6: memref<1x128xf32, #tpu.memory_space<vmem>>, %arg7: memref<4x128xf32, #tpu.memory_space<vmem>>) attributes {dimension_semantics = [#tpu.dimension_semantics<arbitrary>], iteration_bounds = array<i64: 1>, scalar_prefetch = 0 : i64, scratch_operands = 1 : i64, tpu.core_type = #tpu.core_type<tc>, window_params = [{transform_indices = @transform_0, window_bounds = array<i64: 4, 1024>}, {transform_indices = @transform_1, window_bounds = array<i64: 1024, 128>}, {pipeline_mode = #tpu.pipeline_mode<synchronous>, transform_indices = @transform_2, window_bounds = array<i64: 1, 128>}, {pipeline_mode = #tpu.pipeline_mode<synchronous>, transform_indices = @transform_3, window_bounds = array<i64: 1, 128>}, {pipeline_mode = #tpu.pipeline_mode<synchronous>, transform_indices = @transform_4, window_bounds = array<i64: 1, 1>}, {pipeline_mode = #tpu.pipeline_mode<synchronous>, transform_indices = @transform_5, window_bounds = array<i64: 1, 128>}]} {
    %c0_i32 = arith.constant 0 : i32
    %0 = arith.cmpi eq, %arg0, %c0_i32 : i32
    %1 = arith.extui %0 : i1 to i32
    %c0_i32_0 = arith.constant 0 : i32
    %2 = arith.cmpi ne, %1, %c0_i32_0 : i32
    scf.if %2 {
      %c0_10 = arith.constant 0 : index
      %c0_11 = arith.constant 0 : index
      %12 = vector.load %arg3[%c0_10, %c0_11] : memref<1x128xf32, #tpu.memory_space<vmem>>, vector<1x128xf32>
      %13 = vector.shape_cast %12 : vector<1x128xf32> to vector<1x128xf32>
      %14 = vector.broadcast %13 : vector<1x128xf32> to vector<4x128xf32>
      %c0_12 = arith.constant 0 : index
      %c0_13 = arith.constant 0 : index
      %15 = vector.load %arg7[%c0_12, %c0_13] : memref<4x128xf32, #tpu.memory_space<vmem>>, vector<4x128xf32>
      tpu.vector_store %arg7[%c0_12, %c0_13], %14 {strides = array<i32>} : memref<4x128xf32, #tpu.memory_space<vmem>>, vector<4x128xf32>,
    } else {
    }
    %c0 = arith.constant 0 : index
    %c0_1 = arith.constant 0 : index
    %3 = vector.load %arg7[%c0, %c0_1] : memref<4x128xf32, #tpu.memory_space<vmem>>, vector<4x128xf32>
    %c0_2 = arith.constant 0 : index
    %c0_3 = arith.constant 0 : index
    %4 = vector.load %arg1[%c0_2, %c0_3] : memref<4x1024xbf16, #tpu.memory_space<vmem>>, vector<4x1024xbf16>
    %c0_4 = arith.constant 0 : index
    %c0_5 = arith.constant 0 : index
    %5 = vector.load %arg2[%c0_4, %c0_5] : memref<1024x128xbf16, #tpu.memory_space<vmem>>, vector<1024x128xbf16>
    %cst = arith.constant dense<0.000000e+00> : vector<4x128xf32>
    %6 = tpu.matmul %4, %5, %cst {dimension_numbers = #tpu.dot_dimension_numbers<[1], [0], [0], [1], [0, 0, 1, 1], [], []>} : vector<4x1024xbf16>, vector<1024x128xbf16>, vector<4x128xf32> -> vector<4x128xf32>
    %7 = arith.addf %3, %6 : vector<4x128xf32>
    %c0_6 = arith.constant 0 : index
    %c0_7 = arith.constant 0 : index
    %8 = vector.load %arg7[%c0_6, %c0_7] : memref<4x128xf32, #tpu.memory_space<vmem>>, vector<4x128xf32>
    tpu.vector_store %arg7[%c0_6, %c0_7], %7 {strides = array<i32>} : memref<4x128xf32, #tpu.memory_space<vmem>>, vector<4x128xf32>,
    %c0_i32_8 = arith.constant 0 : i32
    %9 = arith.cmpi eq, %arg0, %c0_i32_8 : i32
    %10 = arith.extui %9 : i1 to i32
    %c0_i32_9 = arith.constant 0 : i32
    %11 = arith.cmpi ne, %10, %c0_i32_9 : i32
    scf.if %11 {
      %c0_10 = arith.constant 0 : index
      %c0_11 = arith.constant 0 : index
      %12 = vector.load %arg7[%c0_10, %c0_11] : memref<4x128xf32, #tpu.memory_space<vmem>>, vector<4x128xf32>
      %cst_12 = arith.constant 0.000000e+00 : f32
      %13 = vector.broadcast %cst_12 : f32 to vector<4x128xf32>
      %14 = arith.cmpf ogt, %12, %13 : vector<4x128xf32>
      %cst_13 = arith.constant 2.000000e-01 : f32
      %15 = vector.broadcast %cst_13 : f32 to vector<4x128xf32>
      %16 = arith.mulf %15, %12 : vector<4x128xf32>
      %17 = arith.select %14, %12, %16 : vector<4x128xi1>, vector<4x128xf32>
      %c0_14 = arith.constant 0 : index
      %c0_15 = arith.constant 0 : index
      %18 = vector.load %arg4[%c0_14, %c0_15] : memref<1x128xf32, #tpu.memory_space<vmem>>, vector<1x128xf32>
      %c0_16 = arith.constant 0 : index
      %c0_17 = arith.constant 0 : index
      %19 = vector.load %arg5[%c0_16, %c0_17] : memref<1x1xf32, #tpu.memory_space<vmem>>, vector<1x1xf32>
      %20 = vector.broadcast %18 : vector<1x128xf32> to vector<4x128xf32>
      %21 = arith.mulf %17, %20 : vector<4x128xf32>
      %cst_18 = arith.constant dense<0.000000e+00> : vector<4xf32>
      %22 = vector.multi_reduction <add>, %21, %cst_18 [1] : vector<4x128xf32> to vector<4xf32>
      %23 = vector.shape_cast %22 : vector<4xf32> to vector<4x1xf32>
      %24 = vector.broadcast %19 : vector<1x1xf32> to vector<4x1xf32>
      %25 = arith.addf %23, %24 : vector<4x1xf32>
      %26 = tpu.iota {dimensions = array<i32: 0>} : vector<4x1xi32>
      %c2_i32 = arith.constant 2 : i32
      %27 = vector.broadcast %c2_i32 : i32 to vector<4x1xi32>
      %28 = arith.cmpi slt, %26, %27 : vector<4x1xi32>
      %cst_19 = arith.constant 0.000000e+00 : f32
      %29 = vector.broadcast %cst_19 : f32 to vector<4x1xf32>
      %30 = arith.select %28, %25, %29 : vector<4x1xi1>, vector<4x1xf32>
      %31 = vector.shape_cast %30 : vector<4x1xf32> to vector<1x4x1xf32>
      %cst_20 = arith.constant dense<0.000000e+00> : vector<1xf32>
      %32 = vector.multi_reduction <add>, %31, %cst_20 [1, 2] : vector<1x4x1xf32> to vector<1xf32>
      %33 = vector.shape_cast %32 : vector<1xf32> to vector<1x1x1xf32>
      %34 = vector.extract %33[0, 0, 0] : f32 from vector<1x1x1xf32>
      %cst_21 = arith.constant 2.000000e+00 : f32
      %35 = arith.divf %34, %cst_21 : f32
      %cst_22 = arith.constant 0.000000e+00 : f32
      %36 = vector.broadcast %cst_22 : f32 to vector<4x1xf32>
      %37 = arith.select %28, %36, %25 : vector<4x1xi1>, vector<4x1xf32>
      %38 = vector.shape_cast %37 : vector<4x1xf32> to vector<1x4x1xf32>
      %cst_23 = arith.constant dense<0.000000e+00> : vector<1xf32>
      %39 = vector.multi_reduction <add>, %38, %cst_23 [1, 2] : vector<1x4x1xf32> to vector<1xf32>
      %40 = vector.shape_cast %39 : vector<1xf32> to vector<1x1x1xf32>
      %41 = vector.extract %40[0, 0, 0] : f32 from vector<1x1x1xf32>
      %cst_24 = arith.constant 2.000000e+00 : f32
      %42 = arith.divf %41, %cst_24 : f32
      %43 = vector.broadcast %35 : f32 to vector<4x1xf32>
      %44 = arith.subf %25, %43 : vector<4x1xf32>
      %45 = vector.broadcast %42 : f32 to vector<4x1xf32>
      %46 = arith.subf %25, %45 : vector<4x1xf32>
      %cst_25 = arith.constant 0.000000e+00 : f32
      %47 = vector.broadcast %cst_25 : f32 to vector<4x1xf32>
      %48 = arith.maximumf %44, %47 : vector<4x1xf32>
      %cst_26 = arith.constant 1.000000e+00 : f32
      %49 = vector.broadcast %cst_26 : f32 to vector<4x1xf32>
      %50 = arith.mulf %44, %49 : vector<4x1xf32>
      %51 = arith.subf %48, %50 : vector<4x1xf32>
      %52 = math.absf %44 : vector<4x1xf32>
      %cst_27 = arith.constant 0.000000e+00 : f32
      %53 = vector.broadcast %cst_27 : f32 to vector<4x1xf32>
      %54 = arith.subf %53, %52 : vector<4x1xf32>
      %55 = math.exp %54 : vector<4x1xf32>
      %56 = math.log1p %55 : vector<4x1xf32>
      %57 = arith.addf %51, %56 : vector<4x1xf32>
      %cst_28 = arith.constant 0.000000e+00 : f32
      %58 = vector.broadcast %cst_28 : f32 to vector<4x1xf32>
      %59 = arith.select %28, %58, %57 : vector<4x1xi1>, vector<4x1xf32>
      %60 = vector.shape_cast %59 : vector<4x1xf32> to vector<1x4x1xf32>
      %cst_29 = arith.constant dense<0.000000e+00> : vector<1xf32>
      %61 = vector.multi_reduction <add>, %60, %cst_29 [1, 2] : vector<1x4x1xf32> to vector<1xf32>
      %62 = vector.shape_cast %61 : vector<1xf32> to vector<1x1x1xf32>
      %63 = vector.extract %62[0, 0, 0] : f32 from vector<1x1x1xf32>
      %cst_30 = arith.constant 2.000000e+00 : f32
      %64 = arith.divf %63, %cst_30 : f32
      %cst_31 = arith.constant 0.000000e+00 : f32
      %65 = vector.broadcast %cst_31 : f32 to vector<4x1xf32>
      %66 = arith.maximumf %46, %65 : vector<4x1xf32>
      %cst_32 = arith.constant 0.000000e+00 : f32
      %67 = vector.broadcast %cst_32 : f32 to vector<4x1xf32>
      %68 = arith.mulf %46, %67 : vector<4x1xf32>
      %69 = arith.subf %66, %68 : vector<4x1xf32>
      %70 = math.absf %46 : vector<4x1xf32>
      %cst_33 = arith.constant 0.000000e+00 : f32
      %71 = vector.broadcast %cst_33 : f32 to vector<4x1xf32>
      %72 = arith.subf %71, %70 : vector<4x1xf32>
      %73 = math.exp %72 : vector<4x1xf32>
      %74 = math.log1p %73 : vector<4x1xf32>
      %75 = arith.addf %69, %74 : vector<4x1xf32>
      %cst_34 = arith.constant 0.000000e+00 : f32
      %76 = vector.broadcast %cst_34 : f32 to vector<4x1xf32>
      %77 = arith.select %28, %75, %76 : vector<4x1xi1>, vector<4x1xf32>
      %78 = vector.shape_cast %77 : vector<4x1xf32> to vector<1x4x1xf32>
      %cst_35 = arith.constant dense<0.000000e+00> : vector<1xf32>
      %79 = vector.multi_reduction <add>, %78, %cst_35 [1, 2] : vector<1x4x1xf32> to vector<1xf32>
      %80 = vector.shape_cast %79 : vector<1xf32> to vector<1x1x1xf32>
      %81 = vector.extract %80[0, 0, 0] : f32 from vector<1x1x1xf32>
      %cst_36 = arith.constant 2.000000e+00 : f32
      %82 = arith.divf %81, %cst_36 : f32
      %83 = arith.addf %82, %64 : f32
      %cst_37 = arith.constant 5.000000e-01 : f32
      %84 = arith.mulf %cst_37, %83 : f32
      %85 = tpu.iota {dimensions = array<i32: 1>} : vector<1x128xi32>
      %c0_i32_38 = arith.constant 0 : i32
      %86 = vector.broadcast %c0_i32_38 : i32 to vector<1x128xi32>
      %87 = arith.cmpi eq, %85, %86 : vector<1x128xi32>
      %cst_39 = arith.constant 0.000000e+00 : f32
      %88 = vector.broadcast %84 : f32 to vector<1x128xf32>
      %89 = vector.broadcast %cst_39 : f32 to vector<1x128xf32>
      %90 = arith.select %87, %88, %89 : vector<1x128xi1>, vector<1x128xf32>
      %c1_i32 = arith.constant 1 : i32
      %91 = vector.broadcast %c1_i32 : i32 to vector<1x128xi32>
      %92 = arith.cmpi eq, %85, %91 : vector<1x128xi32>
      %cst_40 = arith.constant 0.000000e+00 : f32
      %93 = vector.broadcast %64 : f32 to vector<1x128xf32>
      %94 = vector.broadcast %cst_40 : f32 to vector<1x128xf32>
      %95 = arith.select %92, %93, %94 : vector<1x128xi1>, vector<1x128xf32>
      %96 = arith.addf %90, %95 : vector<1x128xf32>
      %c2_i32_41 = arith.constant 2 : i32
      %97 = vector.broadcast %c2_i32_41 : i32 to vector<1x128xi32>
      %98 = arith.cmpi eq, %85, %97 : vector<1x128xi32>
      %cst_42 = arith.constant 0.000000e+00 : f32
      %99 = vector.broadcast %82 : f32 to vector<1x128xf32>
      %100 = vector.broadcast %cst_42 : f32 to vector<1x128xf32>
      %101 = arith.select %98, %99, %100 : vector<1x128xi1>, vector<1x128xf32>
      %102 = arith.addf %96, %101 : vector<1x128xf32>
      %c3_i32 = arith.constant 3 : i32
      %103 = vector.broadcast %c3_i32 : i32 to vector<1x128xi32>
      %104 = arith.cmpi eq, %85, %103 : vector<1x128xi32>
      %cst_43 = arith.constant 0.000000e+00 : f32
      %105 = vector.broadcast %42 : f32 to vector<1x128xf32>
      %106 = vector.broadcast %cst_43 : f32 to vector<1x128xf32>
      %107 = arith.select %104, %105, %106 : vector<1x128xi1>, vector<1x128xf32>
      %108 = arith.addf %102, %107 : vector<1x128xf32>
      %c4_i32 = arith.constant 4 : i32
      %109 = vector.broadcast %c4_i32 : i32 to vector<1x128xi32>
      %110 = arith.cmpi eq, %85, %109 : vector<1x128xi32>
      %cst_44 = arith.constant 0.000000e+00 : f32
      %111 = vector.broadcast %35 : f32 to vector<1x128xf32>
      %112 = vector.broadcast %cst_44 : f32 to vector<1x128xf32>
      %113 = arith.select %110, %111, %112 : vector<1x128xi1>, vector<1x128xf32>
      %114 = arith.addf %108, %113 : vector<1x128xf32>
      %c0_45 = arith.constant 0 : index
      %c0_46 = arith.constant 0 : index
      %115 = vector.load %arg6[%c0_45, %c0_46] : memref<1x128xf32, #tpu.memory_space<vmem>>, vector<1x128xf32>
      tpu.vector_store %arg6[%c0_45, %c0_46], %114 {strides = array<i32>} : memref<1x128xf32, #tpu.memory_space<vmem>>, vector<1x128xf32>,
    } else {
    }
    return
  }
  func.func @transform_0(%arg0: i32) -> (i32, i32) {
    %c0_i32 = arith.constant 0 : i32
    %c0_i32_0 = arith.constant 0 : i32
    return %c0_i32, %arg0 : i32, i32
  }
  func.func @transform_1(%arg0: i32) -> (i32, i32) {
    %c0_i32 = arith.constant 0 : i32
    %c0_i32_0 = arith.constant 0 : i32
    return %arg0, %c0_i32 : i32, i32
  }
  func.func @transform_2(%arg0: i32) -> (i32, i32) {
    %c0_i32 = arith.constant 0 : i32
    %c0_i32_0 = arith.constant 0 : i32
    %c0_i32_1 = arith.constant 0 : i32
    return %c0_i32, %c0_i32_0 : i32, i32
  }
  func.func @transform_3(%arg0: i32) -> (i32, i32) {
    %c0_i32 = arith.constant 0 : i32
    %c0_i32_0 = arith.constant 0 : i32
    %c0_i32_1 = arith.constant 0 : i32
    return %c0_i32, %c0_i32_0 : i32, i32
  }
  func.func @transform_4(%arg0: i32) -> (i32, i32) {
    %c0_i32 = arith.constant 0 : i32
    %c0_i32_0 = arith.constant 0 : i32
    %c0_i32_1 = arith.constant 0 : i32
    return %c0_i32, %c0_i32_0 : i32, i32
  }
  func.func @transform_5(%arg0: i32) -> (i32, i32) {
    %c0_i32 = arith.constant 0 : i32
    %c0_i32_0 = arith.constant 0 : i32
    %c0_i32_1 = arith.constant 0 : i32
    return %c0_i32, %c0_i32_0 : i32, i32
  }
}

</mosaic_0001>

<llo_original>
// kernel: tpu_custom_call.1
$region0: #{tpu_custom_call.1}
  #allocation0 [shape = 'u32[]', space=smem, size = 0x4, offset = 0x4, fixed_abs, tag = 'smem constant byte address 0x4 - core index']
  #allocation1 [shape = 'u32[144,128]{1,0:T(1,128)}', space=vmem, size = 0x12000, scoped, tag = 'internal scratch']
  #allocation2 [shape = 'f32[4,128]{1,0:T(4,128)}', space=vmem, size = 0x800, scoped, tag = 'scratch operand']
  #allocation3 [shape = 'f32[1,1]{1,0:T(1,128)S(1)}', space=vmem, size = 0x200, scoped, tag = 'scoped memory for tpu_custom_call.1']
  %s0 = inlined_call_operand.hbm [shape: bf16[4,1024], index: 0, kind: input, shape index: {}]
  %s1 = inlined_call_operand.hbm [shape: bf16[1024,128], index: 1, kind: input, shape index: {}]
  %s2 = inlined_call_operand.vmem [shape: f32[1,128], index: 2, kind: input, shape index: {}]
  %s3 = inlined_call_operand.vmem [shape: f32[1,128], index: 3, kind: input, shape index: {}]
  %s4 = inlined_call_operand.<no memory space> [shape: f32[1,1], index: 4, kind: input, shape index: {}]
  %s5 = inlined_call_operand.hbm [shape: f32[1,128], index: 5, kind: output, shape index: {}]
  %s6 = sld [smem:[#allocation0]]
  $region46: #{tpu_custom_call.1} parent=0
    _
  %s8 = ssub.s32 1, %s6
  %s9 = scalar_select 0, %s8, %s6
  %v10 = vstv %s4
  %11 = vst [vmem:[#allocation3] sm:$0x1] %v10
  $region1: #{tpu_custom_call.1} parent=0
    #allocation4 [shape = 'u8[8192]{0}', space=vmem, size = 0x2000, scoped, tag = 'input window, operand 0, single buffered']
    #allocation5 [shape = 's32[1]{0}', space=sflag, size = 0x4, scoped, tag = 'scoped memory for tpu_custom_call.1']
    #allocation6 [shape = 's32[1]{0}', space=sflag, size = 0x4, scoped, tag = 'scoped memory for tpu_custom_call.1']
    #allocation7 [shape = 'u8[262144]{0}', space=vmem, size = 0x40000, scoped, tag = 'input window, operand 1, single buffered']
    #allocation8 [shape = 's32[1]{0}', space=sflag, size = 0x4, scoped, tag = 'scoped memory for tpu_custom_call.1']
    #allocation9 [shape = 'u8[512]{0}', space=vmem, size = 0x400, scoped, tag = 'output window, operand 0, single buffered']
    %12 = vsyncpa [#allocation5], 0
    %13 = vsyncpa [#allocation8], 0
    %14 = vsyncpa [#allocation6], 0
    // Predicated region
    $region2: #{tpu_custom_call.1} parent=1 // pred_check
      _
    $region3: #{tpu_custom_call.1} parent=1 // pred_check_branch
      %16 = sbr.rel (0) target = $region5
    $region4: #{tpu_custom_call.1} parent=1 // pred_region
      %s18 = ssub.s32 256, 256
      %19 = vsyncadd [#allocation5], %s18
      %s21 = sshll.u32 [#allocation4], 4
      %s22 = int_to_ptr.vmem [resolvable:$true] %s21
      %24 = dma.hbm_to_vmem [thread:$0]  %s0, 256, %s22, [#allocation5]
    $region5: #{tpu_custom_call.1} parent=1 // pred_fallthru
      _
    // Predicated region
    $region6: #{tpu_custom_call.1} parent=1 // pred_check
      _
    $region7: #{tpu_custom_call.1} parent=1 // pred_check_branch
      %26 = sbr.rel (0) target = $region9
    $region8: #{tpu_custom_call.1} parent=1 // pred_region
      %s28 = ssub.s32 8192, 8192
      %29 = vsyncadd [#allocation8], %s28
      %s30 = sshll.u32 [#allocation7], 4
      %s31 = int_to_ptr.vmem [resolvable:$true] %s30
      %36 = dma.hbm_to_vmem [thread:$0]  %s1, 8192, %s31, [#allocation8], 64, 64, 4
    $region9: #{tpu_custom_call.1} parent=1 // pred_fallthru
      _
    // Predicated region
    $region10: #{tpu_custom_call.1} parent=1 // pred_check
      _
    $region11: #{tpu_custom_call.1} parent=1 // pred_check_branch
      %38 = sbr.rel (0) target = $region13
    $region12: #{tpu_custom_call.1} parent=1 // pred_region
      _
    $region13: #{tpu_custom_call.1} parent=1 // pred_fallthru
      _
    // Predicated region
    $region14: #{tpu_custom_call.1} parent=1 // pred_check
      _
    $region15: #{tpu_custom_call.1} parent=1 // pred_check_branch
      %40 = sbr.rel (0) target = $region17
    $region16: #{tpu_custom_call.1} parent=1 // pred_region
      _
    $region17: #{tpu_custom_call.1} parent=1 // pred_fallthru
      _
    // Predicated region
    $region18: #{tpu_custom_call.1} parent=1 // pred_check
      _
    $region19: #{tpu_custom_call.1} parent=1 // pred_check_branch
      %42 = sbr.rel (0) target = $region21
    $region20: #{tpu_custom_call.1} parent=1 // pred_region
      _
    $region21: #{tpu_custom_call.1} parent=1 // pred_fallthru
      _
    // Predicated region
    $region22: #{tpu_custom_call.1} parent=1 // pred_check
      _
    $region23: #{tpu_custom_call.1} parent=1 // pred_check_branch
      %44 = sbr.rel (0) target = $region25
    $region24: #{tpu_custom_call.1} parent=1 // pred_region
      %45 = dma.done [#allocation5], 256
    $region25: #{tpu_custom_call.1} parent=1 // pred_fallthru
      _
    // Predicated region
    $region26: #{tpu_custom_call.1} parent=1 // pred_check
      _
    $region27: #{tpu_custom_call.1} parent=1 // pred_check_branch
      %47 = sbr.rel (0) target = $region29
    $region28: #{tpu_custom_call.1} parent=1 // pred_region
      %48 = dma.done [#allocation8], 8192
    $region29: #{tpu_custom_call.1} parent=1 // pred_fallthru
      _
    %p50 = scmp.eq.s32.totalorder 0, 0
    // Predicated region
    $region30: #{tpu_custom_call.1} parent=1 // pred_check
      %p51 = pneg %p50
    $region31: #{tpu_custom_call.1} parent=1 // pred_check_branch
      %53 = sbr.rel (%p51) target = $region33
    $region32: #{tpu_custom_call.1} parent=1 // pred_region
      %v54 = vld [vmem:[%s2] sm:$0x1]
      %v56 = vlaneseq
      %v57 = vshrl.u32 %v56, 7
      %v58 = vsub.s32 0, %v57
      %v59 = vrot.slane %v54, %v58
      %61 = vst [vmem:[#allocation2] sm:$0xf] %v59
    $region33: #{tpu_custom_call.1} parent=1 // pred_fallthru
      _
    %v62 = vld [vmem:[#allocation2] sm:$0xf]
    %v63 = vld [vmem:[#allocation4] sm:$0xff]
    %v64 = vld [vmem:[#allocation4 + $0x8] sm:$0xff]
    %v65 = vld [vmem:[#allocation7] sm:$0xf]
    %v66 = vld [vmem:[#allocation7 + $0x4] sm:$0xf]
    %v67 = vld [vmem:[#allocation7 + $0x8] sm:$0xf]
    %v68 = vld [vmem:[#allocation7 + $0xc] sm:$0xf]
    %v69 = vld [vmem:[#allocation7 + $0x10] sm:$0xf]
    %v70 = vld [vmem:[#allocation7 + $0x14] sm:$0xf]
    %v71 = vld [vmem:[#allocation7 + $0x18] sm:$0xf]
    %v72 = vld [vmem:[#allocation7 + $0x1c] sm:$0xf]
    %v73 = vld [vmem:[#allocation7 + $0x20] sm:$0xf]
    %v74 = vld [vmem:[#allocation7 + $0x24] sm:$0xf]
    %v75 = vld [vmem:[#allocation7 + $0x28] sm:$0xf]
    %v76 = vld [vmem:[#allocation7 + $0x2c] sm:$0xf]
    %v77 = vld [vmem:[#allocation7 + $0x30] sm:$0xf]
    %v78 = vld [vmem:[#allocation7 + $0x34] sm:$0xf]
    %v79 = vld [vmem:[#allocation7 + $0x38] sm:$0xf]
    %v80 = vld [vmem:[#allocation7 + $0x3c] sm:$0xf]
    %v81 = vld [vmem:[#allocation7 + $0x40] sm:$0xf]
    %v82 = vld [vmem:[#allocation7 + $0x44] sm:$0xf]
    %v83 = vld [vmem:[#allocation7 + $0x48] sm:$0xf]
    %v84 = vld [vmem:[#allocation7 + $0x4c] sm:$0xf]
    %v85 = vld [vmem:[#allocation7 + $0x50] sm:$0xf]
    %v86 = vld [vmem:[#allocation7 + $0x54] sm:$0xf]
    %v87 = vld [vmem:[#allocation7 + $0x58] sm:$0xf]
    %v88 = vld [vmem:[#allocation7 + $0x5c] sm:$0xf]
    %v89 = vld [vmem:[#allocation7 + $0x60] sm:$0xf]
    %v90 = vld [vmem:[#allocation7 + $0x64] sm:$0xf]
    %v91 = vld [vmem:[#allocation7 + $0x68] sm:$0xf]
    %v92 = vld [vmem:[#allocation7 + $0x6c] sm:$0xf]
    %v93 = vld [vmem:[#allocation7 + $0x70] sm:$0xf]
    %v94 = vld [vmem:[#allocation7 + $0x74] sm:$0xf]
    %v95 = vld [vmem:[#allocation7 + $0x78] sm:$0xf]
    %v96 = vld [vmem:[#allocation7 + $0x7c] sm:$0xf]
    %v97 = vld [vmem:[#allocation7 + $0x80] sm:$0xf]
    %v98 = vld [vmem:[#allocation7 + $0x84] sm:$0xf]
    %v99 = vld [vmem:[#allocation7 + $0x88] sm:$0xf]
    %v100 = vld [vmem:[#allocation7 + $0x8c] sm:$0xf]
    %v101 = vld [vmem:[#allocation7 + $0x90] sm:$0xf]
    %v102 = vld [vmem:[#allocation7 + $0x94] sm:$0xf]
    %v103 = vld [vmem:[#allocation7 + $0x98] sm:$0xf]
    %v104 = vld [vmem:[#allocation7 + $0x9c] sm:$0xf]
    %v105 = vld [vmem:[#allocation7 + $0xa0] sm:$0xf]
    %v106 = vld [vmem:[#allocation7 + $0xa4] sm:$0xf]
    %v107 = vld [vmem:[#allocation7 + $0xa8] sm:$0xf]
    %v108 = vld [vmem:[#allocation7 + $0xac] sm:$0xf]
    %v109 = vld [vmem:[#allocation7 + $0xb0] sm:$0xf]
    %v110 = vld [vmem:[#allocation7 + $0xb4] sm:$0xf]
    %v111 = vld [vmem:[#allocation7 + $0xb8] sm:$0xf]
    %v112 = vld [vmem:[#allocation7 + $0xbc] sm:$0xf]
    %v113 = vld [vmem:[#allocation7 + $0xc0] sm:$0xf]
    %v114 = vld [vmem:[#allocation7 + $0xc4] sm:$0xf]
    %v115 = vld [vmem:[#allocation7 + $0xc8] sm:$0xf]
    %v116 = vld [vmem:[#allocation7 + $0xcc] sm:$0xf]
    %v117 = vld [vmem:[#allocation7 + $0xd0] sm:$0xf]
    %v118 = vld [vmem:[#allocation7 + $0xd4] sm:$0xf]
    %v119 = vld [vmem:[#allocation7 + $0xd8] sm:$0xf]
    %v120 = vld [vmem:[#allocation7 + $0xdc] sm:$0xf]
    %v121 = vld [vmem:[#allocation7 + $0xe0] sm:$0xf]
    %v122 = vld [vmem:[#allocation7 + $0xe4] sm:$0xf]
    %v123 = vld [vmem:[#allocation7 + $0xe8] sm:$0xf]
    %v124 = vld [vmem:[#allocation7 + $0xec] sm:$0xf]
    %v125 = vld [vmem:[#allocation7 + $0xf0] sm:$0xf]
    %v126 = vld [vmem:[#allocation7 + $0xf4] sm:$0xf]
    %v127 = vld [vmem:[#allocation7 + $0xf8] sm:$0xf]
    %v128 = vld [vmem:[#allocation7 + $0xfc] sm:$0xf]
    %v129 = vld [vmem:[#allocation7 + $0x100] sm:$0xf]
    %v130 = vld [vmem:[#allocation7 + $0x104] sm:$0xf]
    %v131 = vld [vmem:[#allocation7 + $0x108] sm:$0xf]
    %v132 = vld [vmem:[#allocation7 + $0x10c] sm:$0xf]
    %v133 = vld [vmem:[#allocation7 + $0x110] sm:$0xf]
    %v134 = vld [vmem:[#allocation7 + $0x114] sm:$0xf]
    %v135 = vld [vmem:[#allocation7 + $0x118] sm:$0xf]
    %v136 = vld [vmem:[#allocation7 + $0x11c] sm:$0xf]
    %v137 = vld [vmem:[#allocation7 + $0x120] sm:$0xf]
    %v138 = vld [vmem:[#allocation7 + $0x124] sm:$0xf]
    %v139 = vld [vmem:[#allocation7 + $0x128] sm:$0xf]
    %v140 = vld [vmem:[#allocation7 + $0x12c] sm:$0xf]
    %v141 = vld [vmem:[#allocation7 + $0x130] sm:$0xf]
    %v142 = vld [vmem:[#allocation7 + $0x134] sm:$0xf]
    %v143 = vld [vmem:[#allocation7 + $0x138] sm:$0xf]
    %v144 = vld [vmem:[#allocation7 + $0x13c] sm:$0xf]
    %v145 = vld [vmem:[#allocation7 + $0x140] sm:$0xf]
    %v146 = vld [vmem:[#allocation7 + $0x144] sm:$0xf]
    %v147 = vld [vmem:[#allocation7 + $0x148] sm:$0xf]
    %v148 = vld [vmem:[#allocation7 + $0x14c] sm:$0xf]
    %v149 = vld [vmem:[#allocation7 + $0x150] sm:$0xf]
    %v150 = vld [vmem:[#allocation7 + $0x154] sm:$0xf]
    %v151 = vld [vmem:[#allocation7 + $0x158] sm:$0xf]
    %v152 = vld [vmem:[#allocation7 + $0x15c] sm:$0xf]
    %v153 = vld [vmem:[#allocation7 + $0x160] sm:$0xf]
    %v154 = vld [vmem:[#allocation7 + $0x164] sm:$0xf]
    %v155 = vld [vmem:[#allocation7 + $0x168] sm:$0xf]
    %v156 = vld [vmem:[#allocation7 + $0x16c] sm:$0xf]
    %v157 = vld [vmem:[#allocation7 + $0x170] sm:$0xf]
    %v158 = vld [vmem:[#allocation7 + $0x174] sm:$0xf]
    %v159 = vld [vmem:[#allocation7 + $0x178] sm:$0xf]
    %v160 = vld [vmem:[#allocation7 + $0x17c] sm:$0xf]
    %v161 = vld [vmem:[#allocation7 + $0x180] sm:$0xf]
    %v162 = vld [vmem:[#allocation7 + $0x184] sm:$0xf]
    %v163 = vld [vmem:[#allocation7 + $0x188] sm:$0xf]
    %v164 = vld [vmem:[#allocation7 + $0x18c] sm:$0xf]
    %v165 = vld [vmem:[#allocation7 + $0x190] sm:$0xf]
    %v166 = vld [vmem:[#allocation7 + $0x194] sm:$0xf]
    %v167 = vld [vmem:[#allocation7 + $0x198] sm:$0xf]
    %v168 = vld [vmem:[#allocation7 + $0x19c] sm:$0xf]
    %v169 = vld [vmem:[#allocation7 + $0x1a0] sm:$0xf]
    %v170 = vld [vmem:[#allocation7 + $0x1a4] sm:$0xf]
    %v171 = vld [vmem:[#allocation7 + $0x1a8] sm:$0xf]
    %v172 = vld [vmem:[#allocation7 + $0x1ac] sm:$0xf]
    %v173 = vld [vmem:[#allocation7 + $0x1b0] sm:$0xf]
    %v174 = vld [vmem:[#allocation7 + $0x1b4] sm:$0xf]
    %v175 = vld [vmem:[#allocation7 + $0x1b8] sm:$0xf]
    %v176 = vld [vmem:[#allocation7 + $0x1bc] sm:$0xf]
    %v177 = vld [vmem:[#allocation7 + $0x1c0] sm:$0xf]
    %v178 = vld [vmem:[#allocation7 + $0x1c4] sm:$0xf]
    %v179 = vld [vmem:[#allocation7 + $0x1c8] sm:$0xf]
    %v180 = vld [vmem:[#allocation7 + $0x1cc] sm:$0xf]
    %v181 = vld [vmem:[#allocation7 + $0x1d0] sm:$0xf]
    %v182 = vld [vmem:[#allocation7 + $0x1d4] sm:$0xf]
    %v183 = vld [vmem:[#allocation7 + $0x1d8] sm:$0xf]
    %v184 = vld [vmem:[#allocation7 + $0x1dc] sm:$0xf]
    %v185 = vld [vmem:[#allocation7 + $0x1e0] sm:$0xf]
    %v186 = vld [vmem:[#allocation7 + $0x1e4] sm:$0xf]
    %v187 = vld [vmem:[#allocation7 + $0x1e8] sm:$0xf]
    %v188 = vld [vmem:[#allocation7 + $0x1ec] sm:$0xf]
    %v189 = vld [vmem:[#allocation7 + $0x1f0] sm:$0xf]
    %v190 = vld [vmem:[#allocation7 + $0x1f4] sm:$0xf]
    %v191 = vld [vmem:[#allocation7 + $0x1f8] sm:$0xf]
    %v192 = vld [vmem:[#allocation7 + $0x1fc] sm:$0xf]
    %v195 = vcombine.high %v63, %v63
    %v197 = vunpack.c.l.s4 1983009808
    %v198 = vunpack.c.0.s8 %v197
    %v199 = vlaneseq
    %v200 = vshrl.u32 %v199, 7
    %v201 = vsub.s32 %v198, %v200
    %v202 = vrot.slane %v63, %v201
    %v204 = vunpack.c.l.s4 1983009808
    %v205 = vunpack.c.0.s8 %v204
    %v206 = vlaneseq
    %v207 = vshrl.u32 %v206, 7
    %v208 = vsub.s32 %v205, %v207
    %v209 = vrot.slane %v195, %v208
    %v210 = vcombine.high %v202, %v202
    %v211 = vcombine.high %v209, %v209
    %v212 = vcombine.high %v64, %v64
    %v214 = vunpack.c.l.s4 1983009808
    %v215 = vunpack.c.0.s8 %v214
    %v216 = vlaneseq
    %v217 = vshrl.u32 %v216, 7
    %v218 = vsub.s32 %v215, %v217
    %v219 = vrot.slane %v64, %v218
    %v221 = vunpack.c.l.s4 1983009808
    %v222 = vunpack.c.0.s8 %v221
    %v223 = vlaneseq
    %v224 = vshrl.u32 %v223, 7
    %v225 = vsub.s32 %v222, %v224
    %v226 = vrot.slane %v212, %v225
    %v227 = vcombine.high %v219, %v219
    %v228 = vcombine.high %v226, %v226
    %v365 = vunpack.c.l.b16 %v65
    %v366 = vunpack.c.l.b16 %v66
    %v367 = vunpack.c.l.b16 %v67
    %v368 = vunpack.c.l.b16 %v68
    %v369 = vunpack.c.l.b16 %v69
    %v370 = vunpack.c.l.b16 %v70
    %v371 = vunpack.c.l.b16 %v71
    %v372 = vunpack.c.l.b16 %v72
    %v373 = vunpack.c.l.b16 %v73
    %v374 = vunpack.c.l.b16 %v74
    %v375 = vunpack.c.l.b16 %v75
    %v376 = vunpack.c.l.b16 %v76
    %v377 = vunpack.c.l.b16 %v77
    %v378 = vunpack.c.l.b16 %v78
    %v379 = vunpack.c.l.b16 %v79
    %v380 = vunpack.c.l.b16 %v80
    %v381 = vunpack.c.l.b16 %v81
    %v382 = vunpack.c.l.b16 %v82
    %v383 = vunpack.c.l.b16 %v83
    %v384 = vunpack.c.l.b16 %v84
    %v385 = vunpack.c.l.b16 %v85
    %v386 = vunpack.c.l.b16 %v86
    %v387 = vunpack.c.l.b16 %v87
    %v388 = vunpack.c.l.b16 %v88
    %v389 = vunpack.c.l.b16 %v89
    %v390 = vunpack.c.l.b16 %v90
    %v391 = vunpack.c.l.b16 %v91
    %v392 = vunpack.c.l.b16 %v92
    %v393 = vunpack.c.l.b16 %v93
    %v394 = vunpack.c.l.b16 %v94
    %v395 = vunpack.c.l.b16 %v95
    %v396 = vunpack.c.l.b16 %v96
    %v397 = vunpack.c.l.b16 %v97
    %v398 = vunpack.c.l.b16 %v98
    %v399 = vunpack.c.l.b16 %v99
    %v400 = vunpack.c.l.b16 %v100
    %v401 = vunpack.c.l.b16 %v101
    %v402 = vunpack.c.l.b16 %v102
    %v403 = vunpack.c.l.b16 %v103
    %v404 = vunpack.c.l.b16 %v104
    %v405 = vunpack.c.l.b16 %v105
    %v406 = vunpack.c.l.b16 %v106
    %v407 = vunpack.c.l.b16 %v107
    %v408 = vunpack.c.l.b16 %v108
    %v409 = vunpack.c.l.b16 %v109
    %v410 = vunpack.c.l.b16 %v110
    %v411 = vunpack.c.l.b16 %v111
    %v412 = vunpack.c.l.b16 %v112
    %v413 = vunpack.c.l.b16 %v113
    %v414 = vunpack.c.l.b16 %v114
    %v415 = vunpack.c.l.b16 %v115
    %v416 = vunpack.c.l.b16 %v116
    %v417 = vunpack.c.l.b16 %v117
    %v418 = vunpack.c.l.b16 %v118
    %v419 = vunpack.c.l.b16 %v119
    %v420 = vunpack.c.l.b16 %v120
    %v421 = vunpack.c.l.b16 %v121
    %v422 = vunpack.c.l.b16 %v122
    %v423 = vunpack.c.l.b16 %v123
    %v424 = vunpack.c.l.b16 %v124
    %v425 = vunpack.c.l.b16 %v125
    %v426 = vunpack.c.l.b16 %v126
    %v427 = vunpack.c.l.b16 %v127
    %v428 = vunpack.c.l.b16 %v128
    %v429 = vunpack.c.l.b16 %v129
    %v430 = vunpack.c.l.b16 %v130
    %v431 = vunpack.c.l.b16 %v131
    %v432 = vunpack.c.l.b16 %v132
    %v433 = vunpack.c.l.b16 %v133
    %v434 = vunpack.c.l.b16 %v134
    %v435 = vunpack.c.l.b16 %v135
    %v436 = vunpack.c.l.b16 %v136
    %v437 = vunpack.c.l.b16 %v137
    %v438 = vunpack.c.l.b16 %v138
    %v439 = vunpack.c.l.b16 %v139
    %v440 = vunpack.c.l.b16 %v140
    %v441 = vunpack.c.l.b16 %v141
    %v442 = vunpack.c.l.b16 %v142
    %v443 = vunpack.c.l.b16 %v143
    %v444 = vunpack.c.l.b16 %v144
    %v445 = vunpack.c.l.b16 %v145
    %v446 = vunpack.c.l.b16 %v146
    %v447 = vunpack.c.l.b16 %v147
    %v448 = vunpack.c.l.b16 %v148
    %v449 = vunpack.c.l.b16 %v149
    %v450 = vunpack.c.l.b16 %v150
    %v451 = vunpack.c.l.b16 %v151
    %v452 = vunpack.c.l.b16 %v152
    %v453 = vunpack.c.l.b16 %v153
    %v454 = vunpack.c.l.b16 %v154
    %v455 = vunpack.c.l.b16 %v155
    %v456 = vunpack.c.l.b16 %v156
    %v457 = vunpack.c.l.b16 %v157
    %v458 = vunpack.c.l.b16 %v158
    %v459 = vunpack.c.l.b16 %v159
    %v460 = vunpack.c.l.b16 %v160
    %v461 = vunpack.c.l.b16 %v161
    %v462 = vunpack.c.l.b16 %v162
    %v463 = vunpack.c.l.b16 %v163
    %v464 = vunpack.c.l.b16 %v164
    %v465 = vunpack.c.l.b16 %v165
    %v466 = vunpack.c.l.b16 %v166
    %v467 = vunpack.c.l.b16 %v167
    %v468 = vunpack.c.l.b16 %v168
    %v469 = vunpack.c.l.b16 %v169
    %v470 = vunpack.c.l.b16 %v170
    %v471 = vunpack.c.l.b16 %v171
    %v472 = vunpack.c.l.b16 %v172
    %v473 = vunpack.c.l.b16 %v173
    %v474 = vunpack.c.l.b16 %v174
    %v475 = vunpack.c.l.b16 %v175
    %v476 = vunpack.c.l.b16 %v176
    %v477 = vunpack.c.l.b16 %v177
    %v478 = vunpack.c.l.b16 %v178
    %v479 = vunpack.c.l.b16 %v179
    %v480 = vunpack.c.l.b16 %v180
    %v481 = vunpack.c.l.b16 %v181
    %v482 = vunpack.c.l.b16 %v182
    %v483 = vunpack.c.l.b16 %v183
    %v484 = vunpack.c.l.b16 %v184
    %v485 = vunpack.c.l.b16 %v185
    %v486 = vunpack.c.l.b16 %v186
    %v487 = vunpack.c.l.b16 %v187
    %v488 = vunpack.c.l.b16 %v188
    %v489 = vunpack.c.l.b16 %v189
    %v490 = vunpack.c.l.b16 %v190
    %v491 = vunpack.c.l.b16 %v191
    %v492 = vunpack.c.l.b16 %v192
    %v493 = vpack.c.b16 %v366, %v365
    %v494 = vpack.c.b16 %v368, %v367
    %v495 = vpack.c.b16 %v370, %v369
    %v496 = vpack.c.b16 %v372, %v371
    %v497 = vpack.c.b16 %v374, %v373
    %v498 = vpack.c.b16 %v376, %v375
    %v499 = vpack.c.b16 %v378, %v377
    %v500 = vpack.c.b16 %v380, %v379
    %v501 = vpack.c.b16 %v382, %v381
    %v502 = vpack.c.b16 %v384, %v383
    %v503 = vpack.c.b16 %v386, %v385
    %v504 = vpack.c.b16 %v388, %v387
    %v505 = vpack.c.b16 %v390, %v389
    %v506 = vpack.c.b16 %v392, %v391
    %v507 = vpack.c.b16 %v394, %v393
    %v508 = vpack.c.b16 %v396, %v395
    %v509 = vpack.c.b16 %v398, %v397
    %v510 = vpack.c.b16 %v400, %v399
    %v511 = vpack.c.b16 %v402, %v401
    %v512 = vpack.c.b16 %v404, %v403
    %v513 = vpack.c.b16 %v406, %v405
    %v514 = vpack.c.b16 %v408, %v407
    %v515 = vpack.c.b16 %v410, %v409
    %v516 = vpack.c.b16 %v412, %v411
    %v517 = vpack.c.b16 %v414, %v413
    %v518 = vpack.c.b16 %v416, %v415
    %v519 = vpack.c.b16 %v418, %v417
    %v520 = vpack.c.b16 %v420, %v419
    %v521 = vpack.c.b16 %v422, %v421
    %v522 = vpack.c.b16 %v424, %v423
    %v523 = vpack.c.b16 %v426, %v425
    %v524 = vpack.c.b16 %v428, %v427
    %v525 = vpack.c.b16 %v430, %v429
    %v526 = vpack.c.b16 %v432, %v431
    %v527 = vpack.c.b16 %v434, %v433
    %v528 = vpack.c.b16 %v436, %v435
    %v529 = vpack.c.b16 %v438, %v437
    %v530 = vpack.c.b16 %v440, %v439
    %v531 = vpack.c.b16 %v442, %v441
    %v532 = vpack.c.b16 %v444, %v443
    %v533 = vpack.c.b16 %v446, %v445
    %v534 = vpack.c.b16 %v448, %v447
    %v535 = vpack.c.b16 %v450, %v449
    %v536 = vpack.c.b16 %v452, %v451
    %v537 = vpack.c.b16 %v454, %v453
    %v538 = vpack.c.b16 %v456, %v455
    %v539 = vpack.c.b16 %v458, %v457
    %v540 = vpack.c.b16 %v460, %v459
    %v541 = vpack.c.b16 %v462, %v461
    %v542 = vpack.c.b16 %v464, %v463
    %v543 = vpack.c.b16 %v466, %v465
    %v544 = vpack.c.b16 %v468, %v467
    %v545 = vpack.c.b16 %v470, %v469
    %v546 = vpack.c.b16 %v472, %v471
    %v547 = vpack.c.b16 %v474, %v473
    %v548 = vpack.c.b16 %v476, %v475
    %v549 = vpack.c.b16 %v478, %v477
    %v550 = vpack.c.b16 %v480, %v479
    %v551 = vpack.c.b16 %v482, %v481
    %v552 = vpack.c.b16 %v484, %v483
    %v553 = vpack.c.b16 %v486, %v485
    %v554 = vpack.c.b16 %v488, %v487
    %v555 = vpack.c.b16 %v490, %v489
    %v556 = vpack.c.b16 %v492, %v491
    %621 = vmatprep.subr.bf16.mxu0 0
    %622 = vmatpush1.bf16.msra.mxu0 %v500
    %623 = vmatprep.subr.bf16.mxu0 0
    %624 = vmatpush1.bf16.msra.mxu0 %v499
    %625 = vmatprep.subr.bf16.mxu0 0
    %626 = vmatpush1.bf16.msra.mxu0 %v498
    %627 = vmatprep.subr.bf16.mxu0 0
    %628 = vmatpush1.bf16.msra.mxu0 %v497
    %629 = vmatprep.subr.bf16.mxu0 0
    %630 = vmatpush1.bf16.msra.mxu0 %v496
    %631 = vmatprep.subr.bf16.mxu0 0
    %632 = vmatpush1.bf16.msra.mxu0 %v495
    %633 = vmatprep.subr.bf16.mxu0 0
    %634 = vmatpush1.bf16.msra.mxu0 %v494
    %635 = vmatprep.subr.bf16.mxu0 0
    %636 = vmatpush1.bf16.msra.mxu0 %v493
    %637 = vmatprep.subr.bf16.mxu0 0
    %638 = vmatpush2.bf16.msra.mxu0 %v508
    %639 = vmatprep.subr.bf16.mxu0 0
    %640 = vmatpush2.bf16.msra.mxu0 %v507
    %641 = vmatprep.subr.bf16.mxu0 0
    %642 = vmatpush2.bf16.msra.mxu0 %v506
    %643 = vmatprep.subr.bf16.mxu0 0
    %644 = vmatpush2.bf16.msra.mxu0 %v505
    %645 = vmatprep.subr.bf16.mxu0 0
    %646 = vmatpush2.bf16.msra.mxu0 %v504
    %647 = vmatprep.subr.bf16.mxu0 0
    %648 = vmatpush2.bf16.msra.mxu0 %v503
    %649 = vmatprep.subr.bf16.mxu0 0
    %650 = vmatpush2.bf16.msra.mxu0 %v502
    %651 = vmatprep.subr.bf16.mxu0 0
    %652 = vmatpush2.bf16.msra.mxu0 %v501
    %653 = vmatprep.mubr.bf16.mxu0 %v210
    %654 = vmatmul.mubr.bf16.gmra.mxu0 %v202
    %v655 = vpop.f32.mrf.mxu0
    %v656 = vadd.f32 0.0, %v655
    %v657 = vpop.f32.mrf.mxu0
    %v658 = vpop.f32.mrf.mxu0
    %v659 = vpop.f32.mrf.mxu0
    %660 = vdwg.mxu0
    %661 = vmatprep.subr.bf16.mxu0 0
    %662 = vmatpush1.bf16.msra.mxu0 %v516
    %663 = vmatprep.subr.bf16.mxu0 0
    %664 = vmatpush1.bf16.msra.mxu0 %v515
    %665 = vmatprep.subr.bf16.mxu0 0
    %666 = vmatpush1.bf16.msra.mxu0 %v514
    %667 = vmatprep.subr.bf16.mxu0 0
    %668 = vmatpush1.bf16.msra.mxu0 %v513
    %669 = vmatprep.subr.bf16.mxu0 0
    %670 = vmatpush1.bf16.msra.mxu0 %v512
    %671 = vmatprep.subr.bf16.mxu0 0
    %672 = vmatpush1.bf16.msra.mxu0 %v511
    %673 = vmatprep.subr.bf16.mxu0 0
    %674 = vmatpush1.bf16.msra.mxu0 %v510
    %675 = vmatprep.subr.bf16.mxu0 0
    %676 = vmatpush1.bf16.msra.mxu0 %v509
    %677 = vmatprep.subr.bf16.mxu0 0
    %678 = vmatpush2.bf16.msra.mxu0 %v524
    %679 = vmatprep.subr.bf16.mxu0 0
    %680 = vmatpush2.bf16.msra.mxu0 %v523
    %681 = vmatprep.subr.bf16.mxu0 0
    %682 = vmatpush2.bf16.msra.mxu0 %v522
    %683 = vmatprep.subr.bf16.mxu0 0
    %684 = vmatpush2.bf16.msra.mxu0 %v521
    %685 = vmatprep.subr.bf16.mxu0 0
    %686 = vmatpush2.bf16.msra.mxu0 %v520
    %687 = vmatprep.subr.bf16.mxu0 0
    %688 = vmatpush2.bf16.msra.mxu0 %v519
    %689 = vmatprep.subr.bf16.mxu0 0
    %690 = vmatpush2.bf16.msra.mxu0 %v518
    %691 = vmatprep.subr.bf16.mxu0 0
    %692 = vmatpush2.bf16.msra.mxu0 %v517
    %693 = vmatprep.mubr.bf16.mxu0 %v211
    %694 = vmatmul.mubr.bf16.gmra.mxu0 %v209
    %v695 = vpop.f32.mrf.mxu0
    %v696 = vadd.f32 %v656, %v695
    %v697 = vpop.f32.mrf.mxu0
    %v698 = vpop.f32.mrf.mxu0
    %v699 = vpop.f32.mrf.mxu0
    %700 = vdwg.mxu0
    %701 = vmatprep.subr.bf16.mxu0 0
    %702 = vmatpush1.bf16.msra.mxu0 %v532
    %703 = vmatprep.subr.bf16.mxu0 0
    %704 = vmatpush1.bf16.msra.mxu0 %v531
    %705 = vmatprep.subr.bf16.mxu0 0
    %706 = vmatpush1.bf16.msra.mxu0 %v530
    %707 = vmatprep.subr.bf16.mxu0 0
    %708 = vmatpush1.bf16.msra.mxu0 %v529
    %709 = vmatprep.subr.bf16.mxu0 0
    %710 = vmatpush1.bf16.msra.mxu0 %v528
    %711 = vmatprep.subr.bf16.mxu0 0
    %712 = vmatpush1.bf16.msra.mxu0 %v527
    %713 = vmatprep.subr.bf16.mxu0 0
    %714 = vmatpush1.bf16.msra.mxu0 %v526
    %715 = vmatprep.subr.bf16.mxu0 0
    %716 = vmatpush1.bf16.msra.mxu0 %v525
    %717 = vmatprep.subr.bf16.mxu0 0
    %718 = vmatpush2.bf16.msra.mxu0 %v540
    %719 = vmatprep.subr.bf16.mxu0 0
    %720 = vmatpush2.bf16.msra.mxu0 %v539
    %721 = vmatprep.subr.bf16.mxu0 0
    %722 = vmatpush2.bf16.msra.mxu0 %v538
    %723 = vmatprep.subr.bf16.mxu0 0
    %724 = vmatpush2.bf16.msra.mxu0 %v537
    %725 = vmatprep.subr.bf16.mxu0 0
    %726 = vmatpush2.bf16.msra.mxu0 %v536
    %727 = vmatprep.subr.bf16.mxu0 0
    %728 = vmatpush2.bf16.msra.mxu0 %v535
    %729 = vmatprep.subr.bf16.mxu0 0
    %730 = vmatpush2.bf16.msra.mxu0 %v534
    %731 = vmatprep.subr.bf16.mxu0 0
    %732 = vmatpush2.bf16.msra.mxu0 %v533
    %733 = vmatprep.mubr.bf16.mxu0 %v227
    %734 = vmatmul.mubr.bf16.gmra.mxu0 %v219
    %v735 = vpop.f32.mrf.mxu0
    %v736 = vadd.f32 %v696, %v735
    %v737 = vpop.f32.mrf.mxu0
    %v738 = vpop.f32.mrf.mxu0
    %v739 = vpop.f32.mrf.mxu0
    %740 = vdwg.mxu0
    %741 = vmatprep.subr.bf16.mxu0 0
    %742 = vmatpush1.bf16.msra.mxu0 %v548
    %743 = vmatprep.subr.bf16.mxu0 0
    %744 = vmatpush1.bf16.msra.mxu0 %v547
    %745 = vmatprep.subr.bf16.mxu0 0
    %746 = vmatpush1.bf16.msra.mxu0 %v546
    %747 = vmatprep.subr.bf16.mxu0 0
    %748 = vmatpush1.bf16.msra.mxu0 %v545
    %749 = vmatprep.subr.bf16.mxu0 0
    %750 = vmatpush1.bf16.msra.mxu0 %v544
    %751 = vmatprep.subr.bf16.mxu0 0
    %752 = vmatpush1.bf16.msra.mxu0 %v543
    %753 = vmatprep.subr.bf16.mxu0 0
    %754 = vmatpush1.bf16.msra.mxu0 %v542
    %755 = vmatprep.subr.bf16.mxu0 0
    %756 = vmatpush1.bf16.msra.mxu0 %v541
    %757 = vmatprep.subr.bf16.mxu0 0
    %758 = vmatpush2.bf16.msra.mxu0 %v556
    %759 = vmatprep.subr.bf16.mxu0 0
    %760 = vmatpush2.bf16.msra.mxu0 %v555
    %761 = vmatprep.subr.bf16.mxu0 0
    %762 = vmatpush2.bf16.msra.mxu0 %v554
    %763 = vmatprep.subr.bf16.mxu0 0
    %764 = vmatpush2.bf16.msra.mxu0 %v553
    %765 = vmatprep.subr.bf16.mxu0 0
    %766 = vmatpush2.bf16.msra.mxu0 %v552
    %767 = vmatprep.subr.bf16.mxu0 0
    %768 = vmatpush2.bf16.msra.mxu0 %v551
    %769 = vmatprep.subr.bf16.mxu0 0
    %770 = vmatpush2.bf16.msra.mxu0 %v550
    %771 = vmatprep.subr.bf16.mxu0 0
    %772 = vmatpush2.bf16.msra.mxu0 %v549
    %773 = vmatprep.mubr.bf16.mxu0 %v228
    %774 = vmatmul.mubr.bf16.gmra.mxu0 %v226
    %v775 = vpop.f32.mrf.mxu0
    %v776 = vadd.f32 %v736, %v775
    %v777 = vpop.f32.mrf.mxu0
    %v778 = vpop.f32.mrf.mxu0
    %v779 = vpop.f32.mrf.mxu0
    %780 = vdwg.mxu0
    %v781 = vadd.f32 %v62, %v776
    %782 = vst [vmem:[#allocation2] sm:$0xf] %v781
    // Predicated region
    $region34: #{tpu_custom_call.1} parent=1 // pred_check
      %p783 = pneg %p50
    $region35: #{tpu_custom_call.1} parent=1 // pred_check_branch
      %785 = sbr.rel (%p783) target = $region37
    $region36: #{tpu_custom_call.1} parent=1 // pred_region
      %v786 = vld [vmem:[#allocation2] sm:$0xf]
      %vm787 = vcmp.gt.f32.partialorder %v786, 0.0
      %v788 = vmul.f32 %v786, 0.2
      %v789 = vsel %vm787, %v786, %v788
      %v790 = vld [vmem:[%s3] sm:$0x1]
      %v791 = vld [vmem:[#allocation3] sm:$0x1]
      %v793 = vlaneseq
      %v794 = vshrl.u32 %v793, 7
      %v795 = vsub.s32 0, %v794
      %v796 = vrot.slane %v790, %v795
      %v798 = vmul.f32 %v789, %v796
      %vm799 = vcmask 1043456
      %v800 = vsel %vm799, %v798, 0.0
      %801 = vadd.xlane.f32.xlu0 %v800
      %v802 = vpop.xlane.xlu0 %801
      %v804 = vlaneseq
      %v805 = vshrl.u32 %v804, 7
      %v806 = vsub.s32 0, %v805
      %v807 = vrot.slane %v791, %v806
      %v809 = vadd.f32 %v802, %v807
      %v810 = vlaneseq
      %v811 = vshrl.u32 %v810, 7
      %vm812 = vcmp.lt.s32.totalorder %v811, 2
      %v813 = vsel %vm812, %v809, 0.0
      %vm814 = vcmask 3072
      %v815 = vsel %vm814, %v813, 0.0
      %816 = vadd.xlane.f32.xlu0 %v815
      %v817 = vpop.xlane.xlu0 %816
      %v818 = vrot.slane %v817, 4
      %v819 = vadd.f32 %v817, %v818
      %v820 = vrot.slane %v819, 2
      %v821 = vadd.f32 %v819, %v820
      %v822 = vrot.slane %v821, 1
      %v823 = vadd.f32 %v821, %v822
      %s824 = vtos %v823
      %v825 = vrcp.pop 2.0
      %s826 = vtos %v825
      %s827 = smul.f32 %s824, %s826
      %v828 = vsel %vm812, 0.0, %v809
      %v829 = vsel %vm814, %v828, 0.0
      %830 = vadd.xlane.f32.xlu0 %v829
      %v831 = vpop.xlane.xlu0 %830
      %v832 = vrot.slane %v831, 4
      %v833 = vadd.f32 %v831, %v832
      %v834 = vrot.slane %v833, 2
      %v835 = vadd.f32 %v833, %v834
      %v836 = vrot.slane %v835, 1
      %v837 = vadd.f32 %v835, %v836
      %s838 = vtos %v837
      %v839 = vrcp.pop 2.0
      %s840 = vtos %v839
      %s841 = smul.f32 %s838, %s840
      %v842 = vstv %s827
      %v843 = vsub.f32 %v809, %v842
      %v844 = vstv %s841
      %v845 = vsub.f32 %v809, %v844
      %v846 = vmax.f32 %v843, 0.0
      %v847 = vsub.f32 %v846, %v843
      %v848 = vand.u32 2147483647, %v843
      %v849 = vsub.f32 0.0, %v848
      %v850 = vmul.f32 %v849, 1.442695
      %v851 = vpow.pop %v850
      %v852 = vadd.f32 %v851, 1.0
      %v853 = vlog2.pop %v852
      %v854 = vmul.f32 %v853, 0.6931472
      %v855 = vmul.f32 -0.5, %v851
      %v856 = vadd.f32 %v855, 1.0
      %v857 = vmul.f32 %v856, %v851
      %v858 = vand.u32 2147483647, %v851
      %vm859 = vcmp.lt.f32.partialorder %v858, 0.0004427343
      %v860 = vsel %vm859, %v857, %v854
      %v861 = vadd.f32 %v847, %v860
      %v862 = vsel %vm812, 0.0, %v861
      %v863 = vsel %vm814, %v862, 0.0
      %864 = vadd.xlane.f32.xlu0 %v863
      %v865 = vpop.xlane.xlu0 %864
      %v866 = vrot.slane %v865, 4
      %v867 = vadd.f32 %v865, %v866
      %v868 = vrot.slane %v867, 2
      %v869 = vadd.f32 %v867, %v868
      %v870 = vrot.slane %v869, 1
      %v871 = vadd.f32 %v869, %v870
      %s872 = vtos %v871
      %v873 = vrcp.pop 2.0
      %s874 = vtos %v873
      %s875 = smul.f32 %s872, %s874
      %v876 = vmax.f32 %v845, 0.0
      %v877 = vmul.f32 %v845, 0.0
      %v878 = vsub.f32 %v876, %v877
      %v879 = vand.u32 2147483647, %v845
      %v880 = vsub.f32 0.0, %v879
      %v881 = vmul.f32 %v880, 1.442695
      %v882 = vpow.pop %v881
      %v883 = vadd.f32 %v882, 1.0
      %v884 = vlog2.pop %v883
      %v885 = vmul.f32 %v884, 0.6931472
      %v886 = vmul.f32 -0.5, %v882
      %v887 = vadd.f32 %v886, 1.0
      %v888 = vmul.f32 %v887, %v882
      %v889 = vand.u32 2147483647, %v882
      %vm890 = vcmp.lt.f32.partialorder %v889, 0.0004427343
      %v891 = vsel %vm890, %v888, %v885
      %v892 = vadd.f32 %v878, %v891
      %v893 = vsel %vm812, %v892, 0.0
      %v894 = vsel %vm814, %v893, 0.0
      %895 = vadd.xlane.f32.xlu0 %v894
      %v896 = vpop.xlane.xlu0 %895
      %v897 = vrot.slane %v896, 4
      %v898 = vadd.f32 %v896, %v897
      %v899 = vrot.slane %v898, 2
      %v900 = vadd.f32 %v898, %v899
      %v901 = vrot.slane %v900, 1
      %v902 = vadd.f32 %v900, %v901
      %s903 = vtos %v902
      %v904 = vrcp.pop 2.0
      %s905 = vtos %v904
      %s906 = smul.f32 %s903, %s905
      %s907 = sadd.f32 %s906, %s875
      %s908 = smul.f32 %s907, 0.5
      %v909 = vlaneseq
      %v910 = vand.u32 %v909, 127
      %vm911 = vcmp.eq.s32.totalorder %v910, 0
      %v912 = vstv %s908
      %v913 = vsel %vm911, %v912, 0.0
      %vm914 = vcmp.eq.s32.totalorder %v910, 1
      %v915 = vstv %s875
      %v916 = vsel %vm914, %v915, 0.0
      %v917 = vadd.f32 %v913, %v916
      %vm918 = vcmp.eq.s32.totalorder %v910, 2
      %v919 = vstv %s906
      %v920 = vsel %vm918, %v919, 0.0
      %v921 = vadd.f32 %v917, %v920
      %vm922 = vcmp.eq.s32.totalorder %v910, 3
      %v923 = vsel %vm922, %v844, 0.0
      %v924 = vadd.f32 %v921, %v923
      %vm925 = vcmp.eq.s32.totalorder %v910, 4
      %v926 = vsel %vm925, %v842, 0.0
      %v927 = vadd.f32 %v924, %v926
      %928 = vst [vmem:[#allocation9] sm:$0x1] %v927
    $region37: #{tpu_custom_call.1} parent=1 // pred_fallthru
      _
    // Predicated region
    $region38: #{tpu_custom_call.1} parent=1 // pred_check
      _
    $region39: #{tpu_custom_call.1} parent=1 // pred_check_branch
      %930 = sbr.rel (0) target = $region41
    $region40: #{tpu_custom_call.1} parent=1 // pred_region
      %s932 = ssub.s32 16, 16
      %933 = vsyncadd [#allocation6], %s932
      %s935 = sshll.u32 [#allocation9], 4
      %s936 = int_to_ptr.vmem [resolvable:$true] %s935
      %938 = dma.vmem_to_hbm [thread:$0]  %s936, 16, %s5, [#allocation6]
    $region41: #{tpu_custom_call.1} parent=1 // pred_fallthru
      _
    // Predicated region
    $region42: #{tpu_custom_call.1} parent=1 // pred_check
      _
    $region43: #{tpu_custom_call.1} parent=1 // pred_check_branch
      %940 = sbr.rel (0) target = $region45
    $region44: #{tpu_custom_call.1} parent=1 // pred_region
      %941 = dma.done [#allocation6], 16
    $region45: #{tpu_custom_call.1} parent=1 // pred_fallthru
      _
    %942 = vsyncpa [#allocation5], 1
    %943 = vsyncpa [#allocation8], 1
    %944 = vsyncpa [#allocation6], 1

</llo_original>
